<compile_context>
chip_gen: v7x
topology: tpu7x:2x2x1
jax: 0.10.0
libtpu: 0.0.40
codegen_flags: <defaults>
</compile_context>

<pallas_src>
import jax
import jax.numpy as jnp
from jax.experimental import pallas as pl
from jax.experimental.pallas import tpu as pltpu


def _sigmoid(x):
    return 1.0 / (1.0 + jnp.exp(-x))


def _af_kernel(x1_ref, x2_ref, gate_w_ref, bias_ref, fuse_w_ref, o_ref):
    """Per-sample kernel body (grid over the batch).

    x1_ref, x2_ref : (C, HW)       one sample, spatial flattened on lanes
    gate_w_ref     : (8 + 2C, 2C)  packed block-diagonal CA weights:
                       rows [0 : 2*C8), cols [0 : 2C)   = squeeze W1 (both CAs)
                       rows [8 : 8+2C), cols [0 : 2*C8) = excite  W2 (both CAs)
    bias_ref       : (8 + 3C, 1)   packed biases:
                       rows [0 : 2*C8)    = squeeze bias
                       rows [8 : 8+2C)    = excite  bias
                       rows [8+2C : 8+3C) = fuse    bias
    fuse_w_ref     : (C, 2C)       1x1 fuse conv weight
    o_ref          : (C, HW)
    """
    C, HW = o_ref.shape
    C8 = C // 8
    inv_hw = 1.0 / HW

    x1 = x1_ref[...]
    x2 = x2_ref[...]

    # Global average pool over the lane axis, kept column-oriented (2C, 1) so
    # no sublane<->lane relayout is needed before the tiny gate matmuls.
    gap = jnp.concatenate(
        [jnp.sum(x1, axis=-1, keepdims=True),
         jnp.sum(x2, axis=-1, keepdims=True)], axis=0) * inv_hw        # (2C, 1)

    w_sq = gate_w_ref[0:2 * C8, :]                                     # (2C8, 2C)
    w_ex = gate_w_ref[8:8 + 2 * C, 0:2 * C8]                           # (2C, 2C8)
    b_sq = bias_ref[0:2 * C8, :]                                       # (2C8, 1)
    b_ex = bias_ref[8:8 + 2 * C, :]                                    # (2C, 1)
    b_f = bias_ref[8 + 2 * C:8 + 3 * C, :]                             # (C, 1)

    # Both CA layers in one squeeze + one excite matmul (block-diag weights).
    h = jnp.maximum(
        jnp.dot(w_sq, gap, preferred_element_type=jnp.float32) + b_sq, 0.0)
    s = _sigmoid(
        jnp.dot(w_ex, h, preferred_element_type=jnp.float32) + b_ex)   # (2C, 1)

    # Apply the per-channel gates while building the concatenated fuse operand,
    # then one lane-dense K=2C MXU matmul (instead of two K=C dots).
    y = jnp.concatenate([x1 * s[0:C, :], x2 * s[C:2 * C, :]], axis=0)  # (2C, HW)
    out = jnp.dot(fuse_w_ref[...], y, preferred_element_type=jnp.float32) + b_f
    o_ref[...] = out.astype(o_ref.dtype)


@jax.jit
def af_forward(x1, x2, params):
    """AF forward.  x1, x2: (N, C, H, W) float32 (PyTorch NCHW). Returns NCHW."""
    N, C, H, W = x1.shape
    HW = H * W
    C8 = params["ca1_w1"].shape[0]              # num_fea // 8

    # Free reshapes: NCHW is contiguous, the lane axis becomes H*W.
    x1f = x1.reshape(N, C, HW)
    x2f = x2.reshape(N, C, HW)

    # ---- pack the 11 tiny parameter tensors into 3 buffers (one-time) ----
    w1a = params["ca1_w1"].reshape(C8, C)
    w1b = params["ca2_w1"].reshape(C8, C)
    w2a = params["ca1_w2"].reshape(C, C8)
    w2b = params["ca2_w2"].reshape(C, C8)

    gate_w = jnp.zeros((8 + 2 * C, 2 * C), jnp.float32)
    gate_w = gate_w.at[0:C8, 0:C].set(w1a)                    # squeeze, CA1
    gate_w = gate_w.at[C8:2 * C8, C:2 * C].set(w1b)           # squeeze, CA2
    gate_w = gate_w.at[8:8 + C, 0:C8].set(w2a)                # excite,  CA1
    gate_w = gate_w.at[8 + C:8 + 2 * C, C8:2 * C8].set(w2b)   # excite,  CA2

    bias = jnp.zeros((8 + 3 * C, 1), jnp.float32)
    bias = bias.at[0:C8, 0].set(params["ca1_b1"])
    bias = bias.at[C8:2 * C8, 0].set(params["ca2_b1"])
    bias = bias.at[8:8 + C, 0].set(params["ca1_b2"])
    bias = bias.at[8 + C:8 + 2 * C, 0].set(params["ca2_b2"])
    bias = bias.at[8 + 2 * C:8 + 3 * C, 0].set(params["fuse_b"])

    fuse_w = params["fuse_w"].reshape(C, 2 * C)

    # ---- specs: per-sample activation/output blocks, resident params ----
    x_spec = pl.BlockSpec((None, C, HW), lambda n: (n, 0, 0))
    o_spec = pl.BlockSpec((None, C, HW), lambda n: (n, 0, 0))
    gate_w_spec = pl.BlockSpec(gate_w.shape, lambda n: (0, 0))
    bias_spec = pl.BlockSpec(bias.shape, lambda n: (0, 0))
    fuse_w_spec = pl.BlockSpec(fuse_w.shape, lambda n: (0, 0))

    param_bytes = 4 * (gate_w.size + bias.size + fuse_w.size)
    act_block_bytes = 4 * C * HW
    # double-buffered x1/x2/out blocks + in-kernel (2C, HW) gated concat + params
    vmem_needed = 6 * act_block_bytes + 3 * 2 * act_block_bytes + param_bytes
    vmem_limit = int(max(min(2 * vmem_needed + (1 << 20), 48 << 20), 8 << 20))

    cost = pl.CostEstimate(
        flops=int(N * (2 * C * 2 * C * HW            # fuse matmul
                       + 2 * 2 * C * HW              # gating + GAP
                       + 2 * (2 * C8 * 2 * C + 2 * C * 2 * C8))),
        transcendentals=int(N * 2 * C),              # sigmoid exps
        bytes_accessed=int(3 * N * act_block_bytes + param_bytes),
    )

    out = pl.pallas_call(
        _af_kernel,
        out_shape=jax.ShapeDtypeStruct((N, C, HW), x1.dtype),
        grid=(N,),
        in_specs=[x_spec, x_spec, gate_w_spec, bias_spec, fuse_w_spec],
        out_specs=o_spec,
        compiler_params=pltpu.CompilerParams(
            dimension_semantics=("parallel",),
            vmem_limit_bytes=vmem_limit),
        cost_estimate=cost,
    )(x1f, x2f, gate_w, bias, fuse_w)
    return out.reshape(N, C, H, W)


def _reference(x1, x2, p):
    """Pure-JAX reference matching the PyTorch AF module (NCHW)."""
    def ca(x, w1, b1, w2, b2):
        gap = jnp.mean(x, axis=(2, 3))                        # (N, C)
        h = jnp.maximum(gap @ w1.T + b1, 0.0)                 # (N, C8)
        s = _sigmoid(h @ w2.T + b2)                           # (N, C)
        return s[:, :, None, None]

    y1 = x1 * ca(x1, p["ca1_w1"], p["ca1_b1"], p["ca1_w2"], p["ca1_b2"])
    y2 = x2 * ca(x2, p["ca2_w1"], p["ca2_b1"], p["ca2_w2"], p["ca2_b2"])
    cat = jnp.concatenate([y1, y2], axis=1)                   # (N, 2C, H, W)
    out = jnp.einsum("oc,nchw->nohw", p["fuse_w"], cat)
    return out + p["fuse_b"][None, :, None, None]


if __name__ == "__main__":
    # num_fea must be a multiple of 8 (the module uses num_fea // 8 channels),
    # so the smallest sensible config is num_fea=16, batch=2, spatial=16.
    N, C, H, W = 2, 16, 16, 16
    C8 = C // 8

    key = jax.random.PRNGKey(0)
    ks = jax.random.split(key, 12)

    x1 = jax.random.normal(ks[0], (N, C, H, W), dtype=jnp.float32)
    x2 = jax.random.normal(ks[1], (N, C, H, W), dtype=jnp.float32)

    params = {
        # CALayer 1 (torch Conv2d 1x1 weights squeezed to (out, in))
        "ca1_w1": 0.2 * jax.random.normal(ks[2], (C8, C), jnp.float32),
        "ca1_b1": 0.2 * jax.random.normal(ks[3], (C8,), jnp.float32),
        "ca1_w2": 0.2 * jax.random.normal(ks[4], (C, C8), jnp.float32),
        "ca1_b2": 0.2 * jax.random.normal(ks[5], (C,), jnp.float32),
        # CALayer 2
        "ca2_w1": 0.2 * jax.random.normal(ks[6], (C8, C), jnp.float32),
        "ca2_b1": 0.2 * jax.random.normal(ks[7], (C8,), jnp.float32),
        "ca2_w2": 0.2 * jax.random.normal(ks[8], (C, C8), jnp.float32),
        "ca2_b2": 0.2 * jax.random.normal(ks[9], (C,), jnp.float32),
        # fuse Conv2d(2C -> C, 1x1)
        "fuse_w": 0.2 * jax.random.normal(ks[10], (C, 2 * C), jnp.float32),
        "fuse_b": 0.2 * jax.random.normal(ks[11], (C,), jnp.float32),
    }

    y = af_forward(x1, x2, params)
    jax.block_until_ready(y)

    y_ref = _reference(x1, x2, params)
    assert y.shape == (N, C, H, W)
    assert jnp.allclose(y, y_ref, atol=1e-4, rtol=1e-4), "mismatch vs reference"

    print("KERNEL_OK")
</pallas_src>

<mosaic_0001>
module attributes {stable_mosaic.version = 11 : i64} {
  func.func @_af_kernel(%arg0: i32, %arg1: memref<1x16x256xf32, #tpu.memory_space<vmem>>, %arg2: memref<1x16x256xf32, #tpu.memory_space<vmem>>, %arg3: memref<40x32xf32, #tpu.memory_space<vmem>>, %arg4: memref<56x1xf32, #tpu.memory_space<vmem>>, %arg5: memref<16x32xf32, #tpu.memory_space<vmem>>, %arg6: memref<1x16x256xf32, #tpu.memory_space<vmem>>) attributes {dimension_semantics = [#tpu.dimension_semantics<parallel>], iteration_bounds = array<i64: 2>, scalar_prefetch = 0 : i64, scratch_operands = 0 : i64, tpu.core_type = #tpu.core_type<tc>, window_params = [{transform_indices = @transform_0, window_bounds = array<i64: 1, 16, 256>}, {transform_indices = @transform_1, window_bounds = array<i64: 1, 16, 256>}, {pipeline_mode = #tpu.pipeline_mode<synchronous>, transform_indices = @transform_2, window_bounds = array<i64: 40, 32>}, {pipeline_mode = #tpu.pipeline_mode<synchronous>, transform_indices = @transform_3, window_bounds = array<i64: 56, 1>}, {pipeline_mode = #tpu.pipeline_mode<synchronous>, transform_indices = @transform_4, window_bounds = array<i64: 16, 32>}, {transform_indices = @transform_5, window_bounds = array<i64: 1, 16, 256>}]} {
    %c0 = arith.constant 0 : index
    %c0_0 = arith.constant 0 : index
    %c0_1 = arith.constant 0 : index
    %0 = vector.load %arg1[%c0, %c0_0, %c0_1] : memref<1x16x256xf32, #tpu.memory_space<vmem>>, vector<1x16x256xf32>
    %1 = vector.shape_cast %0 : vector<1x16x256xf32> to vector<16x256xf32>
    %c0_2 = arith.constant 0 : index
    %c0_3 = arith.constant 0 : index
    %c0_4 = arith.constant 0 : index
    %2 = vector.load %arg2[%c0_2, %c0_3, %c0_4] : memref<1x16x256xf32, #tpu.memory_space<vmem>>, vector<1x16x256xf32>
    %3 = vector.shape_cast %2 : vector<1x16x256xf32> to vector<16x256xf32>
    %cst = arith.constant dense<0.000000e+00> : vector<16xf32>
    %4 = vector.multi_reduction <add>, %1, %cst [1] : vector<16x256xf32> to vector<16xf32>
    %5 = vector.shape_cast %4 : vector<16xf32> to vector<16x1xf32>
    %cst_5 = arith.constant dense<0.000000e+00> : vector<16xf32>
    %6 = vector.multi_reduction <add>, %3, %cst_5 [1] : vector<16x256xf32> to vector<16xf32>
    %7 = vector.shape_cast %6 : vector<16xf32> to vector<16x1xf32>
    %8 = tpu.concatenate %5, %7 in 0 : vector<16x1xf32>, vector<16x1xf32> -> vector<32x1xf32>
    %cst_6 = arith.constant 3.906250e-03 : f32
    %9 = vector.broadcast %cst_6 : f32 to vector<32x1xf32>
    %10 = arith.mulf %8, %9 : vector<32x1xf32>
    %c0_7 = arith.constant 0 : index
    %c0_8 = arith.constant 0 : index
    %11 = vector.load %arg3[%c0_7, %c0_8] : memref<40x32xf32, #tpu.memory_space<vmem>>, vector<4x32xf32>
    %c8 = arith.constant 8 : index
    %c0_9 = arith.constant 0 : index
    %12 = vector.load %arg3[%c8, %c0_9] : memref<40x32xf32, #tpu.memory_space<vmem>>, vector<32x4xf32>
    %c0_10 = arith.constant 0 : index
    %c0_11 = arith.constant 0 : index
    %13 = vector.load %arg4[%c0_10, %c0_11] : memref<56x1xf32, #tpu.memory_space<vmem>>, vector<4x1xf32>
    %c8_12 = arith.constant 8 : index
    %c0_13 = arith.constant 0 : index
    %14 = vector.load %arg4[%c8_12, %c0_13] : memref<56x1xf32, #tpu.memory_space<vmem>>, vector<32x1xf32>
    %c40 = arith.constant 40 : index
    %c0_14 = arith.constant 0 : index
    %15 = vector.load %arg4[%c40, %c0_14] : memref<56x1xf32, #tpu.memory_space<vmem>>, vector<16x1xf32>
    %cst_15 = arith.constant dense<0.000000e+00> : vector<4x1xf32>
    %16 = tpu.matmul %11, %10, %cst_15 {dimension_numbers = #tpu.dot_dimension_numbers<[1], [0], [0], [1], [0, 0, 1, 1], [], []>} : vector<4x32xf32>, vector<32x1xf32>, vector<4x1xf32> -> vector<4x1xf32>
    %17 = arith.addf %16, %13 : vector<4x1xf32>
    %cst_16 = arith.constant 0.000000e+00 : f32
    %18 = vector.broadcast %cst_16 : f32 to vector<4x1xf32>
    %19 = arith.maximumf %17, %18 : vector<4x1xf32>
    %cst_17 = arith.constant dense<0.000000e+00> : vector<32x1xf32>
    %20 = tpu.matmul %12, %19, %cst_17 {dimension_numbers = #tpu.dot_dimension_numbers<[1], [0], [0], [1], [0, 0, 1, 1], [], []>} : vector<32x4xf32>, vector<4x1xf32>, vector<32x1xf32> -> vector<32x1xf32>
    %21 = arith.addf %20, %14 : vector<32x1xf32>
    %cst_18 = arith.constant 0.000000e+00 : f32
    %22 = vector.broadcast %cst_18 : f32 to vector<32x1xf32>
    %23 = arith.subf %22, %21 : vector<32x1xf32>
    %24 = math.exp %23 : vector<32x1xf32>
    %cst_19 = arith.constant 1.000000e+00 : f32
    %25 = vector.broadcast %cst_19 : f32 to vector<32x1xf32>
    %26 = arith.addf %25, %24 : vector<32x1xf32>
    %cst_20 = arith.constant 1.000000e+00 : f32
    %27 = vector.broadcast %cst_20 : f32 to vector<32x1xf32>
    %28 = arith.divf %27, %26 : vector<32x1xf32>
    %29 = vector.extract_strided_slice %28 {offsets = [0, 0], sizes = [16, 1], strides = [1, 1]} : vector<32x1xf32> to vector<16x1xf32>
    %30 = vector.broadcast %29 : vector<16x1xf32> to vector<16x256xf32>
    %31 = arith.mulf %1, %30 : vector<16x256xf32>
    %32 = vector.extract_strided_slice %28 {offsets = [16, 0], sizes = [16, 1], strides = [1, 1]} : vector<32x1xf32> to vector<16x1xf32>
    %33 = vector.broadcast %32 : vector<16x1xf32> to vector<16x256xf32>
    %34 = arith.mulf %3, %33 : vector<16x256xf32>
    %35 = tpu.concatenate %31, %34 in 0 : vector<16x256xf32>, vector<16x256xf32> -> vector<32x256xf32>
    %c0_21 = arith.constant 0 : index
    %c0_22 = arith.constant 0 : index
    %36 = vector.load %arg5[%c0_21, %c0_22] : memref<16x32xf32, #tpu.memory_space<vmem>>, vector<16x32xf32>
    %cst_23 = arith.constant dense<0.000000e+00> : vector<16x256xf32>
    %37 = tpu.matmul %36, %35, %cst_23 {dimension_numbers = #tpu.dot_dimension_numbers<[1], [0], [0], [1], [0, 0, 1, 1], [], []>} : vector<16x32xf32>, vector<32x256xf32>, vector<16x256xf32> -> vector<16x256xf32>
    %38 = vector.broadcast %15 : vector<16x1xf32> to vector<16x256xf32>
    %39 = arith.addf %37, %38 : vector<16x256xf32>
    %c0_24 = arith.constant 0 : index
    %c0_25 = arith.constant 0 : index
    %c0_26 = arith.constant 0 : index
    %40 = vector.load %arg6[%c0_24, %c0_25, %c0_26] : memref<1x16x256xf32, #tpu.memory_space<vmem>>, vector<1x16x256xf32>
    %41 = vector.shape_cast %40 : vector<1x16x256xf32> to vector<16x256xf32>
    %42 = vector.shape_cast %39 : vector<16x256xf32> to vector<1x16x256xf32>
    tpu.vector_store %arg6[%c0_24, %c0_25, %c0_26], %42 {strides = array<i32>} : memref<1x16x256xf32, #tpu.memory_space<vmem>>, vector<1x16x256xf32>,
    return
  }
  func.func @transform_0(%arg0: i32) -> (i32, i32, i32) {
    %c0_i32 = arith.constant 0 : i32
    %c0_i32_0 = arith.constant 0 : i32
    %c0_i32_1 = arith.constant 0 : i32
    return %arg0, %c0_i32, %c0_i32_0 : i32, i32, i32
  }
  func.func @transform_1(%arg0: i32) -> (i32, i32, i32) {
    %c0_i32 = arith.constant 0 : i32
    %c0_i32_0 = arith.constant 0 : i32
    %c0_i32_1 = arith.constant 0 : i32
    return %arg0, %c0_i32, %c0_i32_0 : i32, i32, i32
  }
  func.func @transform_2(%arg0: i32) -> (i32, i32) {
    %c0_i32 = arith.constant 0 : i32
    %c0_i32_0 = arith.constant 0 : i32
    %c0_i32_1 = arith.constant 0 : i32
    return %c0_i32, %c0_i32_0 : i32, i32
  }
  func.func @transform_3(%arg0: i32) -> (i32, i32) {
    %c0_i32 = arith.constant 0 : i32
    %c0_i32_0 = arith.constant 0 : i32
    %c0_i32_1 = arith.constant 0 : i32
    return %c0_i32, %c0_i32_0 : i32, i32
  }
  func.func @transform_4(%arg0: i32) -> (i32, i32) {
    %c0_i32 = arith.constant 0 : i32
    %c0_i32_0 = arith.constant 0 : i32
    %c0_i32_1 = arith.constant 0 : i32
    return %c0_i32, %c0_i32_0 : i32, i32
  }
  func.func @transform_5(%arg0: i32) -> (i32, i32, i32) {
    %c0_i32 = arith.constant 0 : i32
    %c0_i32_0 = arith.constant 0 : i32
    %c0_i32_1 = arith.constant 0 : i32
    return %arg0, %c0_i32, %c0_i32_0 : i32, i32, i32
  }
}

</mosaic_0001>

<llo_original>
// kernel: af_forward.1
$region0: #{af_forward.1}
  #allocation0 [shape = 'u32[]', space=smem, size = 0x4, offset = 0x4, fixed_abs, tag = 'smem constant byte address 0x4 - core index']
  #allocation1 [shape = 'u32[144,128]{1,0:T(1,128)}', space=vmem, size = 0x12000, scoped, tag = 'internal scratch']
  %s0 = inlined_call_operand.vmem [shape: f32[2,16,256], index: 0, kind: input, shape index: {}]
  %s1 = inlined_call_operand.vmem [shape: f32[2,16,256], index: 1, kind: input, shape index: {}]
  %s2 = inlined_call_operand.vmem [shape: f32[40,32], index: 2, kind: input, shape index: {}]
  %s3 = inlined_call_operand.vmem [shape: f32[56,1], index: 3, kind: input, shape index: {}]
  %s4 = inlined_call_operand.vmem [shape: f32[16,32], index: 4, kind: input, shape index: {}]
  %s5 = inlined_call_operand.vmem [shape: f32[2,16,256], index: 5, kind: output, shape index: {}]
  %s6 = sld [smem:[#allocation0]]
  $region53: #{af_forward.1} parent=0
    _
  %s8 = ssub.s32 1, %s6
  %s9 = scalar_select 0, %s8, %s6
  loop: start=0, step=1, limit=4
  $region2: #{af_forward.1} parent=0 // loop_pre_header
    _
  $region3: #{af_forward.1} parent=0 // loop_header
    %s11 = sphi 0, %s15
    %p12 = scmp.ge.s32.totalorder %s11, 4
    %s21 = sphi 0, %s23
    %s24 = sphi 0, %s21
    %s25 = sphi 0, %s24
    %s41 = sphi 0, %s25
    %s47 = sphi 0, %s49
    %s50 = sphi 0, %s47
    %s51 = sphi 0, %s50
    %s67 = sphi 0, %s51
    %s71 = sphi 0, %s71
    %s73 = sphi 0, %s71
    %s74 = sphi 0, %s73
    %s88 = sphi 0, %s74
    %s92 = sphi 0, %s92
    %s94 = sphi 0, %s92
    %s95 = sphi 0, %s94
    %s109 = sphi 0, %s95
    %s113 = sphi 0, %s113
    %s115 = sphi 0, %s113
    %s116 = sphi 0, %s115
    %s130 = sphi 0, %s116
    %s136 = sphi 0, %s138
    %s139 = sphi 0, %s136
    %s140 = sphi 0, %s139
    %s156 = sphi 0, %s140
  $region4: #{af_forward.1} parent=0 // loop_header_branch
    %14 = sbr.rel (%p12) target = $region8
  $region5: #{af_forward.1} parent=0 // loop_body
    %s16 = ssub.s32 %s11, 1
    %s17 = ssub.s32 %s11, 2
    %s18 = sadd.s32 %s11, 1
    %s19 = ssub.s32 %s11, %s18
    %p20 = scmp.eq.s32.totalorder %s19, 0
    %s22 = sadd.s32 %s21, 1
    %s23 = scalar_select %p20, %s21, %s22
    %p26 = pneg %p20
    %p27 = scmp.eq.s32.totalorder %s11, 1
    %p28 = por %p26, %p27
    %p29 = scmp.ne.s32.totalorder %s21, %s24
    %p30 = scmp.eq.s32.totalorder %s11, 0
    %p31 = por %p29, %p30
    %p32 = scmp.ne.s32.totalorder %s21, %s24
    %p33 = scmp.eq.s32.totalorder %s16, 1
    %p34 = por %p32, %p33
    %p35 = scmp.ne.s32.totalorder %s24, %s25
    %p36 = scmp.eq.s32.totalorder %s16, 0
    %p37 = por %p35, %p36
    %p38 = scmp.ne.s32.totalorder %s24, %s25
    %p39 = scmp.eq.s32.totalorder %s17, 1
    %p40 = por %p38, %p39
    %p42 = scmp.ne.s32.totalorder %s25, %s41
    %p43 = scmp.eq.s32.totalorder %s17, 0
    %p44 = por %p42, %p43
    %s45 = ssub.s32 %s11, %s18
    %p46 = scmp.eq.s32.totalorder %s45, 0
    %s48 = sadd.s32 %s47, 1
    %s49 = scalar_select %p46, %s47, %s48
    %p52 = pneg %p46
    %p53 = scmp.eq.s32.totalorder %s11, 1
    %p54 = por %p52, %p53
    %p55 = scmp.ne.s32.totalorder %s47, %s50
    %p56 = scmp.eq.s32.totalorder %s11, 0
    %p57 = por %p55, %p56
    %p58 = scmp.ne.s32.totalorder %s47, %s50
    %p59 = scmp.eq.s32.totalorder %s16, 1
    %p60 = por %p58, %p59
    %p61 = scmp.ne.s32.totalorder %s50, %s51
    %p62 = scmp.eq.s32.totalorder %s16, 0
    %p63 = por %p61, %p62
    %p64 = scmp.ne.s32.totalorder %s50, %s51
    %p65 = scmp.eq.s32.totalorder %s17, 1
    %p66 = por %p64, %p65
    %p68 = scmp.ne.s32.totalorder %s51, %s67
    %p69 = scmp.eq.s32.totalorder %s17, 0
    %p70 = por %p68, %p69
    %s72 = sadd.s32 %s71, 1
    %p75 = scmp.eq.s32.totalorder %s11, 1
    %p76 = scmp.ne.s32.totalorder %s71, %s73
    %p77 = scmp.eq.s32.totalorder %s11, 0
    %p78 = por %p76, %p77
    %p79 = scmp.ne.s32.totalorder %s71, %s73
    %p80 = scmp.eq.s32.totalorder %s16, 1
    %p81 = por %p79, %p80
    %p82 = scmp.ne.s32.totalorder %s73, %s74
    %p83 = scmp.eq.s32.totalorder %s16, 0
    %p84 = por %p82, %p83
    %p85 = scmp.ne.s32.totalorder %s73, %s74
    %p86 = scmp.eq.s32.totalorder %s17, 1
    %p87 = por %p85, %p86
    %p89 = scmp.ne.s32.totalorder %s74, %s88
    %p90 = scmp.eq.s32.totalorder %s17, 0
    %p91 = por %p89, %p90
    %s93 = sadd.s32 %s92, 1
    %p96 = scmp.eq.s32.totalorder %s11, 1
    %p97 = scmp.ne.s32.totalorder %s92, %s94
    %p98 = scmp.eq.s32.totalorder %s11, 0
    %p99 = por %p97, %p98
    %p100 = scmp.ne.s32.totalorder %s92, %s94
    %p101 = scmp.eq.s32.totalorder %s16, 1
    %p102 = por %p100, %p101
    %p103 = scmp.ne.s32.totalorder %s94, %s95
    %p104 = scmp.eq.s32.totalorder %s16, 0
    %p105 = por %p103, %p104
    %p106 = scmp.ne.s32.totalorder %s94, %s95
    %p107 = scmp.eq.s32.totalorder %s17, 1
    %p108 = por %p106, %p107
    %p110 = scmp.ne.s32.totalorder %s95, %s109
    %p111 = scmp.eq.s32.totalorder %s17, 0
    %p112 = por %p110, %p111
    %s114 = sadd.s32 %s113, 1
    %p117 = scmp.eq.s32.totalorder %s11, 1
    %p118 = scmp.ne.s32.totalorder %s113, %s115
    %p119 = scmp.eq.s32.totalorder %s11, 0
    %p120 = por %p118, %p119
    %p121 = scmp.ne.s32.totalorder %s113, %s115
    %p122 = scmp.eq.s32.totalorder %s16, 1
    %p123 = por %p121, %p122
    %p124 = scmp.ne.s32.totalorder %s115, %s116
    %p125 = scmp.eq.s32.totalorder %s16, 0
    %p126 = por %p124, %p125
    %p127 = scmp.ne.s32.totalorder %s115, %s116
    %p128 = scmp.eq.s32.totalorder %s17, 1
    %p129 = por %p127, %p128
    %p131 = scmp.ne.s32.totalorder %s116, %s130
    %p132 = scmp.eq.s32.totalorder %s17, 0
    %p133 = por %p131, %p132
    %s134 = ssub.s32 %s11, %s18
    %p135 = scmp.eq.s32.totalorder %s134, 0
    %s137 = sadd.s32 %s136, 1
    %s138 = scalar_select %p135, %s136, %s137
    %p141 = pneg %p135
    %p142 = scmp.eq.s32.totalorder %s11, 1
    %p143 = por %p141, %p142
    %p144 = scmp.ne.s32.totalorder %s136, %s139
    %p145 = scmp.eq.s32.totalorder %s11, 0
    %p146 = por %p144, %p145
    %p147 = scmp.ne.s32.totalorder %s136, %s139
    %p148 = scmp.eq.s32.totalorder %s16, 1
    %p149 = por %p147, %p148
    %p150 = scmp.ne.s32.totalorder %s139, %s140
    %p151 = scmp.eq.s32.totalorder %s16, 0
    %p152 = por %p150, %p151
    %p153 = scmp.ne.s32.totalorder %s139, %s140
    %p154 = scmp.eq.s32.totalorder %s17, 1
    %p155 = por %p153, %p154
    %p157 = scmp.ne.s32.totalorder %s140, %s156
    %p158 = scmp.eq.s32.totalorder %s17, 0
    %p159 = por %p157, %p158
    %p160 = scmp.le.s32.totalorder 1, %s11
    %p161 = scmp.lt.s32.totalorder %s11, 3
    %p162 = pnand %p160, %p161
    %p163 = pneg %p162
    // Predicated region
    $region9: #{af_forward.1} parent=5 // pred_check
      _
    $region10: #{af_forward.1} parent=5 // pred_check_branch
      %165 = sbr.rel (%p162) target = $region12
    $region11: #{af_forward.1} parent=5 // pred_region
      %s166 = ssub.s32 %s11, 1
      // Predicated region
      $region13: #{af_forward.1} parent=11 // pred_check
        %p167 = pneg %p84
      $region14: #{af_forward.1} parent=11 // pred_check_branch
        %169 = sbr.rel (%p167) target = $region16
      $region15: #{af_forward.1} parent=11 // pred_region
        _
      $region16: #{af_forward.1} parent=11 // pred_fallthru
        _
      // Predicated region
      $region17: #{af_forward.1} parent=11 // pred_check
        %p170 = pneg %p105
      $region18: #{af_forward.1} parent=11 // pred_check_branch
        %172 = sbr.rel (%p170) target = $region20
      $region19: #{af_forward.1} parent=11 // pred_region
        _
      $region20: #{af_forward.1} parent=11 // pred_fallthru
        _
      // Predicated region
      $region21: #{af_forward.1} parent=11 // pred_check
        %p173 = pneg %p126
      $region22: #{af_forward.1} parent=11 // pred_check_branch
        %175 = sbr.rel (%p173) target = $region24
      $region23: #{af_forward.1} parent=11 // pred_region
        _
      $region24: #{af_forward.1} parent=11 // pred_fallthru
        _
    $region12: #{af_forward.1} parent=5 // pred_fallthru
      _
    %p176 = scmp.lt.s32.totalorder %s11, 2
    // Predicated region
    $region25: #{af_forward.1} parent=5 // pred_check
      %p177 = pneg %p176
    $region26: #{af_forward.1} parent=5 // pred_check_branch
      %179 = sbr.rel (%p177) target = $region28
    $region27: #{af_forward.1} parent=5 // pred_region
      // Predicated region
      $region29: #{af_forward.1} parent=27 // pred_check
        %p180 = pneg %p31
      $region30: #{af_forward.1} parent=27 // pred_check_branch
        %182 = sbr.rel (%p180) target = $region32
      $region31: #{af_forward.1} parent=27 // pred_region
        %p183 = scmp.lt.s32.totalorder %s11, 1
        %s184 = scalar_select %p183, %s11, 1
        %s185 = smul.addr %s184, 4
        %s186 = smul.addr %s185, 8
        %s187 = scalar_lea.vmem %s0, %s186
      $region32: #{af_forward.1} parent=27 // pred_fallthru
        _
      // Predicated region
      $region33: #{af_forward.1} parent=27 // pred_check
        %p188 = pneg %p57
      $region34: #{af_forward.1} parent=27 // pred_check_branch
        %190 = sbr.rel (%p188) target = $region36
      $region35: #{af_forward.1} parent=27 // pred_region
        %p191 = scmp.lt.s32.totalorder %s11, 1
        %s192 = scalar_select %p191, %s11, 1
        %s193 = smul.addr %s192, 4
        %s194 = smul.addr %s193, 8
        %s195 = scalar_lea.vmem %s1, %s194
      $region36: #{af_forward.1} parent=27 // pred_fallthru
        _
    $region28: #{af_forward.1} parent=5 // pred_fallthru
      _
    %p196 = scmp.le.s32.totalorder 1, %s11
    %p197 = scmp.lt.s32.totalorder %s11, 3
    %p198 = pnand %p196, %p197
    %p199 = pneg %p198
    // Predicated region
    $region37: #{af_forward.1} parent=5 // pred_check
      _
    $region38: #{af_forward.1} parent=5 // pred_check_branch
      %201 = sbr.rel (%p198) target = $region40
    $region39: #{af_forward.1} parent=5 // pred_region
      %s202 = ssub.s32 %s11, 1
      %p203 = scmp.lt.s32.totalorder %s16, 1
      %s204 = scalar_select %p203, %s16, 1
      %s205 = smul.addr %s204, 4
      %s206 = smul.addr %s205, 8
      %s207 = scalar_lea.vmem %s0, %s206
      %p208 = pneg %p37
      %p209 = pneg %p34
      %p210 = scmp.lt.s32.totalorder %s16, 1
      %s211 = scalar_select %p210, %s16, 1
      %s212 = smul.addr %s211, 4
      %s213 = smul.addr %s212, 8
      %s214 = scalar_lea.vmem %s1, %s213
      %p215 = pneg %p63
      %p216 = pneg %p60
      %p217 = pneg %p84
      %p218 = pneg %p81
      %p219 = pneg %p105
      %p220 = pneg %p102
      %p221 = pneg %p126
      %p222 = pneg %p123
      %p223 = pneg %p152
      %p224 = pneg %p149
      %p225 = scmp.lt.s32.totalorder %s16, 1
      %s226 = scalar_select %p225, %s16, 1
      %s227 = smul.addr %s226, 4
      %s228 = smul.addr %s227, 8
      %s229 = scalar_lea.vmem %s5, %s228
      %p230 = scmp.lt.s32.totalorder %s16, 1
      %s231 = scalar_select %p230, %s16, 1
      %s232 = smul.addr %s231, 4
      %s233 = smul.addr %s232, 8
      %s234 = scalar_lea.vmem %s0, %s233
      %p235 = scmp.lt.s32.totalorder %s16, 1
      %s236 = scalar_select %p235, %s16, 1
      %s237 = smul.addr %s236, 4
      %s238 = smul.addr %s237, 8
      %s239 = scalar_lea.vmem %s1, %s238
      %p240 = scmp.lt.s32.totalorder %s16, 1
      %s241 = scalar_select %p240, %s16, 1
      %s242 = smul.addr %s241, 4
      %s243 = smul.addr %s242, 8
      %s244 = scalar_lea.vmem %s5, %s243
      %v245 = vld [vmem:[%s234] sm:$0xff]
      %v246 = vld [vmem:[%s234 + $0x8] sm:$0xff]
      %v247 = vld [vmem:[%s234 + $0x10] sm:$0xff]
      %v248 = vld [vmem:[%s234 + $0x18] sm:$0xff]
      %v249 = vld [vmem:[%s239] sm:$0xff]
      %v250 = vld [vmem:[%s239 + $0x8] sm:$0xff]
      %v251 = vld [vmem:[%s239 + $0x10] sm:$0xff]
      %v252 = vld [vmem:[%s239 + $0x18] sm:$0xff]
      %v253 = vadd.f32 %v245, %v246
      %254 = vadd.xlane.f32.xlu0 %v253
      %v255 = vpop.xlane.xlu0 %254
      %v256 = vadd.f32 %v247, %v248
      %257 = vadd.xlane.f32.xlu0 %v256
      %v258 = vpop.xlane.xlu0 %257
      %v259 = vadd.f32 %v249, %v250
      %260 = vadd.xlane.f32.xlu0 %v259
      %v261 = vpop.xlane.xlu0 %260
      %v262 = vadd.f32 %v251, %v252
      %263 = vadd.xlane.f32.xlu0 %v262
      %v264 = vpop.xlane.xlu0 %263
      %v265 = vmul.f32 %v255, 0.00390625
      %v266 = vmul.f32 %v258, 0.00390625
      %v267 = vmul.f32 %v261, 0.00390625
      %v268 = vmul.f32 %v264, 0.00390625
      %v269 = vld [vmem:[%s2] sm:$0xf]
      %v270 = vld [vmem:[%s2 + $0x8] sm:$0xff]
      %v271 = vld [vmem:[%s2 + $0x10] sm:$0xff]
      %v272 = vld [vmem:[%s2 + $0x18] sm:$0xff]
      %v273 = vld [vmem:[%s2 + $0x20] sm:$0xff]
      %v274 = vld [vmem:[%s3] sm:$0xf]
      %v275 = vld [vmem:[%s3 + $0x8] sm:$0xff]
      %v276 = vld [vmem:[%s3 + $0x10] sm:$0xff]
      %v277 = vld [vmem:[%s3 + $0x18] sm:$0xff]
      %v278 = vld [vmem:[%s3 + $0x20] sm:$0xff]
      %v279 = vld [vmem:[%s3 + $0x28] sm:$0xff]
      %v280 = vld [vmem:[%s3 + $0x30] sm:$0xff]
      %vm281 = vcmask 261120
      %v283 = vsel %vm281, %v269, 0
      %285 = vmatprep.subr.mxu0 0.0
      %286 = vmatpush1.msra.mxu0 %v265
      %287 = vmatprep.subr.mxu0 0.0
      %288 = vmatpush1.msra.mxu0 %v266
      %289 = vmatprep.subr.mxu0 0.0
      %290 = vmatpush1.msra.mxu0 %v267
      %291 = vmatprep.subr.mxu0 0.0
      %292 = vmatpush1.msra.mxu0 %v268
      %293 = vmatprep.subr.mxu0 0.0
      %294 = vmatpush1.msra.mxu0 0.0
      %295 = vmatprep.subr.mxu0 0.0
      %296 = vmatpush1.msra.mxu0 0.0
      %297 = vmatprep.subr.mxu0 0.0
      %298 = vmatpush1.msra.mxu0 0.0
      %299 = vmatprep.subr.mxu0 0.0
      %300 = vmatpush1.msra.mxu0 0.0
      %301 = vmatprep.subr.mxu0 0.0
      %302 = vmatpush1.msra.mxu0 0.0
      %303 = vmatprep.subr.mxu0 0.0
      %304 = vmatpush1.msra.mxu0 0.0
      %305 = vmatprep.subr.mxu0 0.0
      %306 = vmatpush1.msra.mxu0 0.0
      %307 = vmatprep.subr.mxu0 0.0
      %308 = vmatpush1.msra.mxu0 0.0
      %309 = vmatprep.subr.mxu0 0.0
      %310 = vmatpush1.msra.mxu0 0.0
      %311 = vmatprep.subr.mxu0 0.0
      %312 = vmatpush1.msra.mxu0 0.0
      %313 = vmatprep.subr.mxu0 0.0
      %314 = vmatpush1.msra.mxu0 0.0
      %315 = vmatprep.subr.mxu0 0.0
      %316 = vmatpush1.msra.mxu0 0.0
      %317 = vmatprep.subr.mxu0 0.0
      %318 = vmatpush1.msra.mxu0 0.0
      %319 = vmatprep.subr.mxu0 0.0
      %320 = vmatpush1.msra.mxu0 0.0
      %321 = vmatprep.subr.mxu0 0.0
      %322 = vmatpush1.msra.mxu0 0.0
      %323 = vmatprep.subr.mxu0 0.0
      %324 = vmatpush1.msra.mxu0 0.0
      %325 = vmatprep.subr.mxu0 0.0
      %326 = vmatpush1.msra.mxu0 0.0
      %327 = vmatprep.subr.mxu0 0.0
      %328 = vmatpush1.msra.mxu0 0.0
      %329 = vmatprep.subr.mxu0 0.0
      %330 = vmatpush1.msra.mxu0 0.0
      %331 = vmatprep.subr.mxu0 0.0
      %332 = vmatpush1.msra.mxu0 0.0
      %333 = vmatprep.subr.mxu0 0.0
      %334 = vmatpush1.msra.mxu0 0.0
      %335 = vmatprep.subr.mxu0 0.0
      %336 = vmatpush1.msra.mxu0 0.0
      %337 = vmatprep.subr.mxu0 0.0
      %338 = vmatpush1.msra.mxu0 0.0
      %339 = vmatprep.subr.mxu0 0.0
      %340 = vmatpush1.msra.mxu0 0.0
      %341 = vmatprep.subr.mxu0 0.0
      %342 = vmatpush1.msra.mxu0 0.0
      %343 = vmatprep.subr.mxu0 0.0
      %344 = vmatpush1.msra.mxu0 0.0
      %345 = vmatprep.subr.mxu0 0.0
      %346 = vmatpush1.msra.mxu0 0.0
      %347 = vmatprep.subr.mxu0 0.0
      %348 = vmatpush1.msra.mxu0 0.0
      %349 = vmatprep.mubr.f32.mxu0 0.0
      %350 = vmatmul.mubr.f32.gmra.mrb[0].mxu0 %v283
      %v351 = vpop.f32.mrb[0].mxu0
      %v352 = vadd.f32 %v274, %v351
      %v353 = vpop.f32.mrb[0].mxu0
      %354 = vdwg.mxu0
      %v355 = vmax.f32 %v352, 0.0
      %vm356 = vcmask 31744
      %v358 = vsel %vm356, %v270, 0
      %v361 = vsel %vm356, %v271, 0
      %v364 = vsel %vm356, %v272, 0
      %v367 = vsel %vm356, %v273, 0
      %vm369 = vcmask 1043456
      %v371 = vsel %vm369, %v355, 0
      %373 = vmatprep.subr.mxu0 0.0
      %374 = vmatpush1.msra.mxu0 %v371
      %375 = vmatprep.subr.mxu0 0.0
      %376 = vmatpush1.msra.mxu0 0.0
      %377 = vmatprep.subr.mxu0 0.0
      %378 = vmatpush1.msra.mxu0 0.0
      %379 = vmatprep.subr.mxu0 0.0
      %380 = vmatpush1.msra.mxu0 0.0
      %381 = vmatprep.subr.mxu0 0.0
      %382 = vmatpush1.msra.mxu0 0.0
      %383 = vmatprep.subr.mxu0 0.0
      %384 = vmatpush1.msra.mxu0 0.0
      %385 = vmatprep.subr.mxu0 0.0
      %386 = vmatpush1.msra.mxu0 0.0
      %387 = vmatprep.subr.mxu0 0.0
      %388 = vmatpush1.msra.mxu0 0.0
      %389 = vmatprep.subr.mxu0 0.0
      %390 = vmatpush1.msra.mxu0 0.0
      %391 = vmatprep.subr.mxu0 0.0
      %392 = vmatpush1.msra.mxu0 0.0
      %393 = vmatprep.subr.mxu0 0.0
      %394 = vmatpush1.msra.mxu0 0.0
      %395 = vmatprep.subr.mxu0 0.0
      %396 = vmatpush1.msra.mxu0 0.0
      %397 = vmatprep.subr.mxu0 0.0
      %398 = vmatpush1.msra.mxu0 0.0
      %399 = vmatprep.subr.mxu0 0.0
      %400 = vmatpush1.msra.mxu0 0.0
      %401 = vmatprep.subr.mxu0 0.0
      %402 = vmatpush1.msra.mxu0 0.0
      %403 = vmatprep.subr.mxu0 0.0
      %404 = vmatpush1.msra.mxu0 0.0
      %405 = vmatprep.subr.mxu0 0.0
      %406 = vmatpush1.msra.mxu0 0.0
      %407 = vmatprep.subr.mxu0 0.0
      %408 = vmatpush1.msra.mxu0 0.0
      %409 = vmatprep.subr.mxu0 0.0
      %410 = vmatpush1.msra.mxu0 0.0
      %411 = vmatprep.subr.mxu0 0.0
      %412 = vmatpush1.msra.mxu0 0.0
      %413 = vmatprep.subr.mxu0 0.0
      %414 = vmatpush1.msra.mxu0 0.0
      %415 = vmatprep.subr.mxu0 0.0
      %416 = vmatpush1.msra.mxu0 0.0
      %417 = vmatprep.subr.mxu0 0.0
      %418 = vmatpush1.msra.mxu0 0.0
      %419 = vmatprep.subr.mxu0 0.0
      %420 = vmatpush1.msra.mxu0 0.0
      %421 = vmatprep.subr.mxu0 0.0
      %422 = vmatpush1.msra.mxu0 0.0
      %423 = vmatprep.subr.mxu0 0.0
      %424 = vmatpush1.msra.mxu0 0.0
      %425 = vmatprep.subr.mxu0 0.0
      %426 = vmatpush1.msra.mxu0 0.0
      %427 = vmatprep.subr.mxu0 0.0
      %428 = vmatpush1.msra.mxu0 0.0
      %429 = vmatprep.subr.mxu0 0.0
      %430 = vmatpush1.msra.mxu0 0.0
      %431 = vmatprep.subr.mxu0 0.0
      %432 = vmatpush1.msra.mxu0 0.0
      %433 = vmatprep.subr.mxu0 0.0
      %434 = vmatpush1.msra.mxu0 0.0
      %435 = vmatprep.subr.mxu0 0.0
      %436 = vmatpush1.msra.mxu0 0.0
      %437 = vmatprep.mubr.f32.mxu0 0.0
      %438 = vmatmul.mubr.f32.gmra.mrb[0].mxu0 %v358
      %v439 = vpop.f32.mrb[0].mxu0
      %v440 = vadd.f32 %v275, %v439
      %v441 = vpop.f32.mrb[0].mxu0
      %442 = vmatprep.mubr.f32.mxu0 0.0
      %443 = vmatmul.mubr.f32.gmra.mrb[0].mxu0 %v361
      %v444 = vpop.f32.mrb[0].mxu0
      %v445 = vadd.f32 %v276, %v444
      %v446 = vpop.f32.mrb[0].mxu0
      %447 = vmatprep.mubr.f32.mxu0 0.0
      %448 = vmatmul.mubr.f32.gmra.mrb[0].mxu0 %v364
      %v449 = vpop.f32.mrb[0].mxu0
      %v450 = vadd.f32 %v277, %v449
      %v451 = vpop.f32.mrb[0].mxu0
      %452 = vmatprep.mubr.f32.mxu0 0.0
      %453 = vmatmul.mubr.f32.gmra.mrb[0].mxu0 %v367
      %v454 = vpop.f32.mrb[0].mxu0
      %v455 = vadd.f32 %v278, %v454
      %v456 = vpop.f32.mrb[0].mxu0
      %457 = vdwg.mxu0
      %v458 = vsub.f32 0.0, %v440
      %v459 = vsub.f32 0.0, %v445
      %v460 = vsub.f32 0.0, %v450
      %v461 = vsub.f32 0.0, %v455
      %v462 = vmul.f32 %v458, 1.442695
      %v463 = vpow.pop %v462
      %v464 = vmul.f32 %v459, 1.442695
      %v465 = vpow.pop %v464
      %v466 = vmul.f32 %v460, 1.442695
      %v467 = vpow.pop %v466
      %v468 = vmul.f32 %v461, 1.442695
      %v469 = vpow.pop %v468
      %v470 = vadd.f32 %v463, 1.0
      %v471 = vadd.f32 %v465, 1.0
      %v472 = vadd.f32 %v467, 1.0
      %v473 = vadd.f32 %v469, 1.0
      %v474 = vrcp.pop %v470
      %v475 = vmul.f32 1.0, %v474
      %v476 = vrcp.pop %v471
      %v477 = vmul.f32 1.0, %v476
      %v478 = vrcp.pop %v472
      %v479 = vmul.f32 1.0, %v478
      %v480 = vrcp.pop %v473
      %v481 = vmul.f32 1.0, %v480
      %483 = vset.pattern.permute.xlu0 0
      %484 = vperm.xlu0 %483, %v475
      %v485 = vpop.permute.xlu0 %484
      %488 = vset.pattern.permute.xlu0 0
      %489 = vperm.xlu0 %488, %v477
      %v490 = vpop.permute.xlu0 %489
      %v492 = vmul.f32 %v245, %v485
      %v493 = vmul.f32 %v246, %v485
      %v494 = vmul.f32 %v247, %v490
      %v495 = vmul.f32 %v248, %v490
      %497 = vset.pattern.permute.xlu0 0
      %498 = vperm.xlu0 %497, %v479
      %v499 = vpop.permute.xlu0 %498
      %502 = vset.pattern.permute.xlu0 0
      %503 = vperm.xlu0 %502, %v481
      %v504 = vpop.permute.xlu0 %503
      %v506 = vmul.f32 %v249, %v499
      %v507 = vmul.f32 %v250, %v499
      %v508 = vmul.f32 %v251, %v504
      %v509 = vmul.f32 %v252, %v504
      %v510 = vld [vmem:[%s4] sm:$0xff]
      %v511 = vld [vmem:[%s4 + $0x8] sm:$0xff]
      %513 = vset.pattern.permute.xlu0 0
      %514 = vperm.xlu0 %513, %v279
      %v515 = vpop.permute.xlu0 %514
      %518 = vset.pattern.permute.xlu0 0
      %519 = vperm.xlu0 %518, %v280
      %v520 = vpop.permute.xlu0 %519
      %v523 = vsel %vm281, %v510, 0
      %v526 = vsel %vm281, %v511, 0
      %528 = vmatprep.subr.mxu0 %v493
      %529 = vmatpush1.msra.mxu0 %v492
      %530 = vmatprep.subr.mxu0 %v495
      %531 = vmatpush1.msra.mxu0 %v494
      %532 = vmatprep.subr.mxu0 %v507
      %533 = vmatpush1.msra.mxu0 %v506
      %534 = vmatprep.subr.mxu0 %v509
      %535 = vmatpush1.msra.mxu0 %v508
      %536 = vmatprep.subr.mxu0 0.0
      %537 = vmatpush1.msra.mxu0 0.0
      %538 = vmatprep.subr.mxu0 0.0
      %539 = vmatpush1.msra.mxu0 0.0
      %540 = vmatprep.subr.mxu0 0.0
      %541 = vmatpush1.msra.mxu0 0.0
      %542 = vmatprep.subr.mxu0 0.0
      %543 = vmatpush1.msra.mxu0 0.0
      %544 = vmatprep.subr.mxu0 0.0
      %545 = vmatpush1.msra.mxu0 0.0
      %546 = vmatprep.subr.mxu0 0.0
      %547 = vmatpush1.msra.mxu0 0.0
      %548 = vmatprep.subr.mxu0 0.0
      %549 = vmatpush1.msra.mxu0 0.0
      %550 = vmatprep.subr.mxu0 0.0
      %551 = vmatpush1.msra.mxu0 0.0
      %552 = vmatprep.subr.mxu0 0.0
      %553 = vmatpush1.msra.mxu0 0.0
      %554 = vmatprep.subr.mxu0 0.0
      %555 = vmatpush1.msra.mxu0 0.0
      %556 = vmatprep.subr.mxu0 0.0
      %557 = vmatpush1.msra.mxu0 0.0
      %558 = vmatprep.subr.mxu0 0.0
      %559 = vmatpush1.msra.mxu0 0.0
      %560 = vmatprep.subr.mxu0 0.0
      %561 = vmatpush1.msra.mxu0 0.0
      %562 = vmatprep.subr.mxu0 0.0
      %563 = vmatpush1.msra.mxu0 0.0
      %564 = vmatprep.subr.mxu0 0.0
      %565 = vmatpush1.msra.mxu0 0.0
      %566 = vmatprep.subr.mxu0 0.0
      %567 = vmatpush1.msra.mxu0 0.0
      %568 = vmatprep.subr.mxu0 0.0
      %569 = vmatpush1.msra.mxu0 0.0
      %570 = vmatprep.subr.mxu0 0.0
      %571 = vmatpush1.msra.mxu0 0.0
      %572 = vmatprep.subr.mxu0 0.0
      %573 = vmatpush1.msra.mxu0 0.0
      %574 = vmatprep.subr.mxu0 0.0
      %575 = vmatpush1.msra.mxu0 0.0
      %576 = vmatprep.subr.mxu0 0.0
      %577 = vmatpush1.msra.mxu0 0.0
      %578 = vmatprep.subr.mxu0 0.0
      %579 = vmatpush1.msra.mxu0 0.0
      %580 = vmatprep.subr.mxu0 0.0
      %581 = vmatpush1.msra.mxu0 0.0
      %582 = vmatprep.subr.mxu0 0.0
      %583 = vmatpush1.msra.mxu0 0.0
      %584 = vmatprep.subr.mxu0 0.0
      %585 = vmatpush1.msra.mxu0 0.0
      %586 = vmatprep.subr.mxu0 0.0
      %587 = vmatpush1.msra.mxu0 0.0
      %588 = vmatprep.subr.mxu0 0.0
      %589 = vmatpush1.msra.mxu0 0.0
      %590 = vmatprep.subr.mxu0 0.0
      %591 = vmatpush1.msra.mxu0 0.0
      %592 = vmatprep.mubr.f32.mxu0 0.0
      %593 = vmatmul.mubr.f32.gmra.mrb[0].mxu0 %v523
      %v594 = vpop.f32.mrb[0].mxu0
      %v595 = vadd.f32 %v515, %v594
      %v596 = vpop.f32.mrb[0].mxu0
      %v597 = vadd.f32 %v515, %v596
      %598 = vmatprep.mubr.f32.mxu0 0.0
      %599 = vmatmul.mubr.f32.gmra.mrb[0].mxu0 %v526
      %v600 = vpop.f32.mrb[0].mxu0
      %v601 = vadd.f32 %v520, %v600
      %v602 = vpop.f32.mrb[0].mxu0
      %v603 = vadd.f32 %v520, %v602
      %604 = vdwg.mxu0
      %605 = vst [vmem:[%s244] sm:$0xff] %v595
      %606 = vst [vmem:[%s244 + $0x8] sm:$0xff] %v597
      %607 = vst [vmem:[%s244 + $0x10] sm:$0xff] %v601
      %608 = vst [vmem:[%s244 + $0x18] sm:$0xff] %v603
      %p609 = scmp.lt.s32.totalorder %s16, 1
      %s610 = scalar_select %p609, %s16, 1
      %s611 = smul.addr %s610, 4
      %s612 = smul.addr %s611, 8
      %s613 = scalar_lea.vmem %s5, %s612
      // Predicated region
      $region41: #{af_forward.1} parent=39 // pred_check
        %p614 = pneg %p149
      $region42: #{af_forward.1} parent=39 // pred_check_branch
        %616 = sbr.rel (%p614) target = $region44
      $region43: #{af_forward.1} parent=39 // pred_region
        _
      $region44: #{af_forward.1} parent=39 // pred_fallthru
        _
    $region40: #{af_forward.1} parent=5 // pred_fallthru
      _
    %p617 = scmp.le.s32.totalorder 2, %s11
    // Predicated region
    $region45: #{af_forward.1} parent=5 // pred_check
      %p618 = pneg %p617
    $region46: #{af_forward.1} parent=5 // pred_check_branch
      %620 = sbr.rel (%p618) target = $region48
    $region47: #{af_forward.1} parent=5 // pred_region
      %s621 = ssub.s32 %s11, 2
      // Predicated region
      $region49: #{af_forward.1} parent=47 // pred_check
        %p622 = pneg %p155
      $region50: #{af_forward.1} parent=47 // pred_check_branch
        %624 = sbr.rel (%p622) target = $region52
      $region51: #{af_forward.1} parent=47 // pred_region
        %p625 = scmp.lt.s32.totalorder %s17, 1
        %s626 = scalar_select %p625, %s17, 1
        %s627 = smul.addr %s626, 4
        %s628 = smul.addr %s627, 8
        %s629 = scalar_lea.vmem %s5, %s628
      $region52: #{af_forward.1} parent=47 // pred_fallthru
        _
    $region48: #{af_forward.1} parent=5 // pred_fallthru
      _
  $region6: #{af_forward.1} parent=0 // loop_footer
    %s15 = sadd.s32 1, %s11
  $region7: #{af_forward.1} parent=0 // loop_footer_branch
    %10 = sbr.rel target = $region3
  $region8: #{af_forward.1} parent=0 // loop_exit
    _

</llo_original>
